<compile_context>
chip_gen: v6e
topology: v6e:2x2x1
jax: 0.10.0
libtpu: 0.0.40
codegen_flags: <defaults>
</compile_context>

<pallas_src>
import jax
import jax.numpy as jnp
from jax.experimental import pallas as pl
from jax.experimental.pallas import tpu as pltpu


def _make_cbn_kernel(eps: float, inv_L: float):
    def kernel(x_ref, p_ref, y_ref):
        fb = p_ref.shape[0]

        # Per-component loads straight from the block ref (no 4-D materialize).
        # x block: (N, 2, Fb, HW); component 0 = real, 1 = imag.
        xr = x_ref[:, 0, :, :].astype(jnp.float32)               # (N, Fb, HW)
        xi = x_ref[:, 1, :, :].astype(jnp.float32)

        # Per-channel means over (N, H, W).
        Mr = jnp.sum(xr, axis=(0, 2), keepdims=True) * inv_L     # (1, Fb, 1)
        Mi = jnp.sum(xi, axis=(0, 2), keepdims=True) * inv_L

        # Centered second moments, subtracting the mean on the fly.  The
        # centered values are only live through this reduction; the output
        # pass below uses the raw block with the mean folded into the bias.
        dr = xr - Mr
        di = xi - Mi
        Vrr = jnp.sum(dr * dr, axis=(0, 2), keepdims=True) * inv_L + eps
        Vri = jnp.sum(dr * di, axis=(0, 2), keepdims=True) * inv_L
        Vii = jnp.sum(di * di, axis=(0, 2), keepdims=True) * inv_L + eps

        # Inverse square root of the per-channel 2x2 covariance matrix.
        # (Touches only Fb values per step — negligible vs. the HBM traffic.)
        tau = Vrr + Vii
        delta = Vrr * Vii - Vri * Vri
        s = jnp.sqrt(delta)
        t = jnp.sqrt(tau + 2.0 * s)
        rst = pl.reciprocal(s * t, approx=False)
        Urr = (s + Vii) * rst
        Uii = (s + Vrr) * rst
        Uri = -Vri * rst

        # Affine parameters, packed as (Fb, 5) = [Wrr, Wri, Wii, Br, Bi].
        # Explicitly reshaped to (1, Fb, 1) to match the stat/broadcast layout.
        p = p_ref[...].astype(jnp.float32)
        Wrr = p[:, 0:1].reshape(1, fb, 1)
        Wri = p[:, 1:2].reshape(1, fb, 1)
        Wii = p[:, 2:3].reshape(1, fb, 1)
        Br = p[:, 3:4].reshape(1, fb, 1)
        Bi = p[:, 4:5].reshape(1, fb, 1)

        Zrr = Wrr * Urr + Wri * Uri                              # (1, Fb, 1)
        Zri = Wrr * Uri + Wri * Uii
        Zir = Wri * Urr + Wii * Uri
        Zii = Wri * Uri + Wii * Uii

        # Fold the mean into the bias:  Z*(x - M) + B == Z*x + (B - Z*M).
        Brp = Br - Zrr * Mr - Zri * Mi
        Bip = Bi - Zir * Mr - Zii * Mi

        y_ref[:, 0, :, :] = (Zrr * xr + Zri * xi + Brp).astype(y_ref.dtype)
        y_ref[:, 1, :, :] = (Zir * xr + Zii * xi + Bip).astype(y_ref.dtype)

    return kernel


def _vmem_limit_bytes():
    """Per-generation VMEM limit with headroom for compiler scratch/semaphores.

    ~52 MiB on 64 MiB parts (v7x), ~105-110 MiB on 128 MiB parts (v5e/v6e).
    """
    cap = None
    try:
        info = pltpu.get_tpu_info()
        cap = getattr(info, "vmem_capacity_bytes", None)
    except Exception:
        cap = None
    if not cap:
        cap = 64 << 20  # conservative (v7x-sized) default
    return max(32 << 20, min(int(0.82 * cap), 110 << 20))


def _pick_channel_block(F, N, HW, itemsize, budget_bytes):
    """Channel block Fb dividing F with Fb % 8 == 0 (or Fb == F).

    Budget accounts for the double-buffered in+out blocks (in the I/O dtype)
    plus the f32 working set of the reduction pass.  Among fitting blocks,
    prefer one that leaves >= 8 (else 4, else 2) grid steps so the pipeline
    overlaps DMAs and v7x's two TensorCores both get work; otherwise take the
    largest fitting block.
    """
    io_per_channel = 2 * 2 * (N * 2 * HW * itemsize)   # (in + out) x 2 buffers
    work_per_channel = 4 * N * HW * 4                  # xr/xi/dr/di f32 working set
    per_channel = io_per_channel + work_per_channel
    candidates = [fb for fb in range(1, F + 1)
                  if F % fb == 0 and (fb == F or fb % 8 == 0)]
    fitting = [fb for fb in candidates
               if fb * per_channel + 2 * fb * 5 * 4 <= budget_bytes]
    if not fitting:
        # TODO(synk): a two-phase streaming kernel (moment-accumulate, then
        # normalize) bounds VMEM regardless of N*H*W; fall back to the
        # smallest legal block for now.
        return min(candidates)
    for min_steps in (8, 4, 2):
        piped = [fb for fb in fitting if F // fb >= min_steps]
        if piped:
            return max(piped)
    return max(fitting)


def complex_batchnorm2d(x, Wrr, Wri, Wii, Br, Bi, eps=1e-5):
    """Training-mode forward of ComplexBatchNorm2d.  x: (N, 2F, H, W)."""
    N, C, H, W = x.shape
    F = C // 2
    HW = H * W
    L = N * HW

    # Keep bf16/f16 in HBM (halves memory traffic); anything exotic -> f32.
    if x.dtype not in (jnp.dtype(jnp.float32), jnp.dtype(jnp.bfloat16),
                       jnp.dtype(jnp.float16)):
        x = x.astype(jnp.float32)

    # Free reshape: real half == x2[:, 0], imag half == x2[:, 1].
    x2 = x.reshape(N, 2, F, HW)

    # Pack the five per-channel parameters into one slab -> one DMA per step.
    params = jnp.stack([Wrr, Wri, Wii, Br, Bi], axis=1).astype(jnp.float32)  # (F, 5)

    itemsize = jnp.dtype(x.dtype).itemsize
    vmem_limit = _vmem_limit_bytes()
    Fb = _pick_channel_block(F, N, HW, itemsize, int(0.85 * vmem_limit))
    grid = (F // Fb,)

    y2 = pl.pallas_call(
        _make_cbn_kernel(float(eps), 1.0 / float(L)),
        out_shape=jax.ShapeDtypeStruct((N, 2, F, HW), x.dtype),
        grid=grid,
        in_specs=[
            pl.BlockSpec((N, 2, Fb, HW), lambda f: (0, 0, f, 0)),
            pl.BlockSpec((Fb, 5), lambda f: (f, 0)),
        ],
        out_specs=pl.BlockSpec((N, 2, Fb, HW), lambda f: (0, 0, f, 0)),
        compiler_params=pltpu.CompilerParams(
            dimension_semantics=("parallel",),   # channel blocks are independent
            vmem_limit_bytes=vmem_limit,
        ),
    )(x2, params)

    # Free reshape back to NCHW; no concatenate needed.
    return y2.reshape(N, C, H, W)


def _reference(x, Wrr, Wri, Wii, Br, Bi, eps=1e-5):
    """Plain-JAX replica of the PyTorch forward (training mode)."""
    N, C, H, W = x.shape
    F = C // 2
    xr, xi = x[:, :F], x[:, F:]
    vdim = (1, F, 1, 1)
    Mr = jnp.mean(xr, axis=(0, 2, 3), keepdims=True)
    Mi = jnp.mean(xi, axis=(0, 2, 3), keepdims=True)
    xr, xi = xr - Mr, xi - Mi
    Vrr = jnp.mean(xr * xr, axis=(0, 2, 3), keepdims=True) + eps
    Vri = jnp.mean(xr * xi, axis=(0, 2, 3), keepdims=True)
    Vii = jnp.mean(xi * xi, axis=(0, 2, 3), keepdims=True) + eps
    tau = Vrr + Vii
    delta = Vrr * Vii - Vri * Vri
    s = jnp.sqrt(delta)
    t = jnp.sqrt(tau + 2 * s)
    rst = 1.0 / (s * t)
    Urr = (s + Vii) * rst
    Uii = (s + Vrr) * rst
    Uri = -Vri * rst
    Wrr, Wri, Wii = Wrr.reshape(vdim), Wri.reshape(vdim), Wii.reshape(vdim)
    Zrr = Wrr * Urr + Wri * Uri
    Zri = Wrr * Uri + Wri * Uii
    Zir = Wri * Urr + Wii * Uri
    Zii = Wri * Uri + Wii * Uii
    yr = Zrr * xr + Zri * xi + Br.reshape(vdim)
    yi = Zir * xr + Zii * xi + Bi.reshape(vdim)
    return jnp.concatenate([yr, yi], axis=1)


if __name__ == "__main__":
    key = jax.random.PRNGKey(0)
    N, C, H, W = 2, 4, 16, 16          # C = num_features passed to __init__
    F = C // 2                         # internal num_features

    k_x, k_wri = jax.random.split(key)
    x = jax.random.normal(k_x, (N, C, H, W), dtype=jnp.float32)

    # Deterministic parameter init mirroring reset_parameters().
    Wrr = jnp.ones((F,), jnp.float32)
    Wii = jnp.ones((F,), jnp.float32)
    Wri = jax.random.uniform(k_wri, (F,), jnp.float32, minval=-0.9, maxval=0.9)
    Br = jnp.zeros((F,), jnp.float32)
    Bi = jnp.zeros((F,), jnp.float32)

    out = complex_batchnorm2d(x, Wrr, Wri, Wii, Br, Bi)
    out = jax.block_until_ready(out)

    ref = _reference(x, Wrr, Wri, Wii, Br, Bi)
    assert out.shape == (N, C, H, W)
    assert jnp.allclose(out, ref, atol=1e-4, rtol=1e-4)
    print("KERNEL_OK")
</pallas_src>

<mosaic_0001>
module attributes {stable_mosaic.version = 11 : i64} {
  func.func @kernel(%arg0: i32, %arg1: memref<2x2x2x256xf32, #tpu.memory_space<vmem>>, %arg2: memref<2x5xf32, #tpu.memory_space<vmem>>, %arg3: memref<2x2x2x256xf32, #tpu.memory_space<vmem>>) attributes {dimension_semantics = [#tpu.dimension_semantics<parallel>], iteration_bounds = array<i64: 1>, scalar_prefetch = 0 : i64, scratch_operands = 0 : i64, tpu.core_type = #tpu.core_type<tc>, window_params = [{transform_indices = @transform_0, window_bounds = array<i64: 2, 2, 2, 256>}, {transform_indices = @transform_1, window_bounds = array<i64: 2, 5>}, {transform_indices = @transform_2, window_bounds = array<i64: 2, 2, 2, 256>}]} {
    %c0 = arith.constant 0 : index
    %c0_0 = arith.constant 0 : index
    %c0_1 = arith.constant 0 : index
    %c0_2 = arith.constant 0 : index
    %0 = vector.load %arg1[%c0, %c0_0, %c0_1, %c0_2] : memref<2x2x2x256xf32, #tpu.memory_space<vmem>>, vector<2x1x2x256xf32>
    %1 = vector.shape_cast %0 : vector<2x1x2x256xf32> to vector<2x2x256xf32>
    %c0_3 = arith.constant 0 : index
    %c1 = arith.constant 1 : index
    %c0_4 = arith.constant 0 : index
    %c0_5 = arith.constant 0 : index
    %2 = vector.load %arg1[%c0_3, %c1, %c0_4, %c0_5] : memref<2x2x2x256xf32, #tpu.memory_space<vmem>>, vector<2x1x2x256xf32>
    %3 = vector.shape_cast %2 : vector<2x1x2x256xf32> to vector<2x2x256xf32>
    %cst = arith.constant dense<0.000000e+00> : vector<2xf32>
    %4 = vector.multi_reduction <add>, %1, %cst [0, 2] : vector<2x2x256xf32> to vector<2xf32>
    %5 = vector.shape_cast %4 : vector<2xf32> to vector<1x2x1xf32>
    %cst_6 = arith.constant 0.001953125 : f32
    %6 = vector.broadcast %cst_6 : f32 to vector<1x2x1xf32>
    %7 = arith.mulf %5, %6 : vector<1x2x1xf32>
    %cst_7 = arith.constant dense<0.000000e+00> : vector<2xf32>
    %8 = vector.multi_reduction <add>, %3, %cst_7 [0, 2] : vector<2x2x256xf32> to vector<2xf32>
    %9 = vector.shape_cast %8 : vector<2xf32> to vector<1x2x1xf32>
    %cst_8 = arith.constant 0.001953125 : f32
    %10 = vector.broadcast %cst_8 : f32 to vector<1x2x1xf32>
    %11 = arith.mulf %9, %10 : vector<1x2x1xf32>
    %12 = vector.broadcast %7 : vector<1x2x1xf32> to vector<2x2x256xf32>
    %13 = arith.subf %1, %12 : vector<2x2x256xf32>
    %14 = vector.broadcast %11 : vector<1x2x1xf32> to vector<2x2x256xf32>
    %15 = arith.subf %3, %14 : vector<2x2x256xf32>
    %16 = arith.mulf %13, %13 : vector<2x2x256xf32>
    %cst_9 = arith.constant dense<0.000000e+00> : vector<2xf32>
    %17 = vector.multi_reduction <add>, %16, %cst_9 [0, 2] : vector<2x2x256xf32> to vector<2xf32>
    %18 = vector.shape_cast %17 : vector<2xf32> to vector<1x2x1xf32>
    %cst_10 = arith.constant 0.001953125 : f32
    %19 = vector.broadcast %cst_10 : f32 to vector<1x2x1xf32>
    %20 = arith.mulf %18, %19 : vector<1x2x1xf32>
    %cst_11 = arith.constant 9.99999974E-6 : f32
    %21 = vector.broadcast %cst_11 : f32 to vector<1x2x1xf32>
    %22 = arith.addf %20, %21 : vector<1x2x1xf32>
    %23 = arith.mulf %13, %15 : vector<2x2x256xf32>
    %cst_12 = arith.constant dense<0.000000e+00> : vector<2xf32>
    %24 = vector.multi_reduction <add>, %23, %cst_12 [0, 2] : vector<2x2x256xf32> to vector<2xf32>
    %25 = vector.shape_cast %24 : vector<2xf32> to vector<1x2x1xf32>
    %cst_13 = arith.constant 0.001953125 : f32
    %26 = vector.broadcast %cst_13 : f32 to vector<1x2x1xf32>
    %27 = arith.mulf %25, %26 : vector<1x2x1xf32>
    %28 = arith.mulf %15, %15 : vector<2x2x256xf32>
    %cst_14 = arith.constant dense<0.000000e+00> : vector<2xf32>
    %29 = vector.multi_reduction <add>, %28, %cst_14 [0, 2] : vector<2x2x256xf32> to vector<2xf32>
    %30 = vector.shape_cast %29 : vector<2xf32> to vector<1x2x1xf32>
    %cst_15 = arith.constant 0.001953125 : f32
    %31 = vector.broadcast %cst_15 : f32 to vector<1x2x1xf32>
    %32 = arith.mulf %30, %31 : vector<1x2x1xf32>
    %cst_16 = arith.constant 9.99999974E-6 : f32
    %33 = vector.broadcast %cst_16 : f32 to vector<1x2x1xf32>
    %34 = arith.addf %32, %33 : vector<1x2x1xf32>
    %35 = arith.addf %22, %34 : vector<1x2x1xf32>
    %36 = arith.mulf %22, %34 : vector<1x2x1xf32>
    %37 = arith.mulf %27, %27 : vector<1x2x1xf32>
    %38 = arith.subf %36, %37 : vector<1x2x1xf32>
    %39 = math.sqrt %38 : vector<1x2x1xf32>
    %cst_17 = arith.constant 2.000000e+00 : f32
    %40 = vector.broadcast %cst_17 : f32 to vector<1x2x1xf32>
    %41 = arith.mulf %40, %39 : vector<1x2x1xf32>
    %42 = arith.addf %35, %41 : vector<1x2x1xf32>
    %43 = math.sqrt %42 : vector<1x2x1xf32>
    %44 = arith.mulf %39, %43 : vector<1x2x1xf32>
    %45 = tpu.reciprocal %44 : vector<1x2x1xf32> -> vector<1x2x1xf32>
    %46 = arith.addf %39, %34 : vector<1x2x1xf32>
    %47 = arith.mulf %46, %45 : vector<1x2x1xf32>
    %48 = arith.addf %39, %22 : vector<1x2x1xf32>
    %49 = arith.mulf %48, %45 : vector<1x2x1xf32>
    %cst_18 = arith.constant 0.000000e+00 : f32
    %50 = vector.broadcast %cst_18 : f32 to vector<1x2x1xf32>
    %51 = arith.subf %50, %27 : vector<1x2x1xf32>
    %52 = arith.mulf %51, %45 : vector<1x2x1xf32>
    %c0_19 = arith.constant 0 : index
    %c0_20 = arith.constant 0 : index
    %53 = vector.load %arg2[%c0_19, %c0_20] : memref<2x5xf32, #tpu.memory_space<vmem>>, vector<2x5xf32>
    %54 = vector.extract_strided_slice %53 {offsets = [0, 0], sizes = [2, 1], strides = [1, 1]} : vector<2x5xf32> to vector<2x1xf32>
    %55 = vector.shape_cast %54 : vector<2x1xf32> to vector<1x2x1xf32>
    %56 = vector.extract_strided_slice %53 {offsets = [0, 1], sizes = [2, 1], strides = [1, 1]} : vector<2x5xf32> to vector<2x1xf32>
    %57 = vector.shape_cast %56 : vector<2x1xf32> to vector<1x2x1xf32>
    %58 = vector.extract_strided_slice %53 {offsets = [0, 2], sizes = [2, 1], strides = [1, 1]} : vector<2x5xf32> to vector<2x1xf32>
    %59 = vector.shape_cast %58 : vector<2x1xf32> to vector<1x2x1xf32>
    %60 = vector.extract_strided_slice %53 {offsets = [0, 3], sizes = [2, 1], strides = [1, 1]} : vector<2x5xf32> to vector<2x1xf32>
    %61 = vector.shape_cast %60 : vector<2x1xf32> to vector<1x2x1xf32>
    %62 = vector.extract_strided_slice %53 {offsets = [0, 4], sizes = [2, 1], strides = [1, 1]} : vector<2x5xf32> to vector<2x1xf32>
    %63 = vector.shape_cast %62 : vector<2x1xf32> to vector<1x2x1xf32>
    %64 = arith.mulf %55, %47 : vector<1x2x1xf32>
    %65 = arith.mulf %57, %52 : vector<1x2x1xf32>
    %66 = arith.addf %64, %65 : vector<1x2x1xf32>
    %67 = arith.mulf %55, %52 : vector<1x2x1xf32>
    %68 = arith.mulf %57, %49 : vector<1x2x1xf32>
    %69 = arith.addf %67, %68 : vector<1x2x1xf32>
    %70 = arith.mulf %57, %47 : vector<1x2x1xf32>
    %71 = arith.mulf %59, %52 : vector<1x2x1xf32>
    %72 = arith.addf %70, %71 : vector<1x2x1xf32>
    %73 = arith.mulf %57, %52 : vector<1x2x1xf32>
    %74 = arith.mulf %59, %49 : vector<1x2x1xf32>
    %75 = arith.addf %73, %74 : vector<1x2x1xf32>
    %76 = arith.mulf %66, %7 : vector<1x2x1xf32>
    %77 = arith.subf %61, %76 : vector<1x2x1xf32>
    %78 = arith.mulf %69, %11 : vector<1x2x1xf32>
    %79 = arith.subf %77, %78 : vector<1x2x1xf32>
    %80 = arith.mulf %72, %7 : vector<1x2x1xf32>
    %81 = arith.subf %63, %80 : vector<1x2x1xf32>
    %82 = arith.mulf %75, %11 : vector<1x2x1xf32>
    %83 = arith.subf %81, %82 : vector<1x2x1xf32>
    %84 = vector.broadcast %66 : vector<1x2x1xf32> to vector<2x2x256xf32>
    %85 = arith.mulf %84, %1 : vector<2x2x256xf32>
    %86 = vector.broadcast %69 : vector<1x2x1xf32> to vector<2x2x256xf32>
    %87 = arith.mulf %86, %3 : vector<2x2x256xf32>
    %88 = arith.addf %85, %87 : vector<2x2x256xf32>
    %89 = vector.broadcast %79 : vector<1x2x1xf32> to vector<2x2x256xf32>
    %90 = arith.addf %88, %89 : vector<2x2x256xf32>
    %c0_21 = arith.constant 0 : index
    %c0_22 = arith.constant 0 : index
    %c0_23 = arith.constant 0 : index
    %c0_24 = arith.constant 0 : index
    %91 = vector.load %arg3[%c0_21, %c0_22, %c0_23, %c0_24] : memref<2x2x2x256xf32, #tpu.memory_space<vmem>>, vector<2x1x2x256xf32>
    %92 = vector.shape_cast %91 : vector<2x1x2x256xf32> to vector<2x2x256xf32>
    %93 = vector.shape_cast %90 : vector<2x2x256xf32> to vector<2x1x2x256xf32>
    tpu.vector_store %arg3[%c0_21, %c0_22, %c0_23, %c0_24], %93 {strides = array<i32>} : memref<2x2x2x256xf32, #tpu.memory_space<vmem>>, vector<2x1x2x256xf32>,
    %94 = vector.broadcast %72 : vector<1x2x1xf32> to vector<2x2x256xf32>
    %95 = arith.mulf %94, %1 : vector<2x2x256xf32>
    %96 = vector.broadcast %75 : vector<1x2x1xf32> to vector<2x2x256xf32>
    %97 = arith.mulf %96, %3 : vector<2x2x256xf32>
    %98 = arith.addf %95, %97 : vector<2x2x256xf32>
    %99 = vector.broadcast %83 : vector<1x2x1xf32> to vector<2x2x256xf32>
    %100 = arith.addf %98, %99 : vector<2x2x256xf32>
    %c0_25 = arith.constant 0 : index
    %c1_26 = arith.constant 1 : index
    %c0_27 = arith.constant 0 : index
    %c0_28 = arith.constant 0 : index
    %101 = vector.load %arg3[%c0_25, %c1_26, %c0_27, %c0_28] : memref<2x2x2x256xf32, #tpu.memory_space<vmem>>, vector<2x1x2x256xf32>
    %102 = vector.shape_cast %101 : vector<2x1x2x256xf32> to vector<2x2x256xf32>
    %103 = vector.shape_cast %100 : vector<2x2x256xf32> to vector<2x1x2x256xf32>
    tpu.vector_store %arg3[%c0_25, %c1_26, %c0_27, %c0_28], %103 {strides = array<i32>} : memref<2x2x2x256xf32, #tpu.memory_space<vmem>>, vector<2x1x2x256xf32>,
    return
  }
  func.func @transform_0(%arg0: i32) -> (i32, i32, i32, i32) {
    %c0_i32 = arith.constant 0 : i32
    %c0_i32_0 = arith.constant 0 : i32
    %c0_i32_1 = arith.constant 0 : i32
    %c0_i32_2 = arith.constant 0 : i32
    return %c0_i32, %c0_i32_0, %arg0, %c0_i32_1 : i32, i32, i32, i32
  }
  func.func @transform_1(%arg0: i32) -> (i32, i32) {
    %c0_i32 = arith.constant 0 : i32
    %c0_i32_0 = arith.constant 0 : i32
    return %arg0, %c0_i32 : i32, i32
  }
  func.func @transform_2(%arg0: i32) -> (i32, i32, i32, i32) {
    %c0_i32 = arith.constant 0 : i32
    %c0_i32_0 = arith.constant 0 : i32
    %c0_i32_1 = arith.constant 0 : i32
    %c0_i32_2 = arith.constant 0 : i32
    return %c0_i32, %c0_i32_0, %arg0, %c0_i32_1 : i32, i32, i32, i32
  }
}

</mosaic_0001>

<llo_original>
// kernel: tpu_custom_call.1
$region0: #{tpu_custom_call.1}
  #allocation0 [shape = 'u32[]', space=smem, size = 0x4, offset = 0x4, fixed_abs, tag = 'smem constant byte address 0x4 - core index']
  #allocation1 [shape = 'u32[144,128]{1,0:T(1,128)}', space=vmem, size = 0x12000, scoped, tag = 'internal scratch']
  %s0 = inlined_call_operand.hbm [shape: f32[2,2,2,256], index: 0, kind: input, shape index: {}]
  %s1 = inlined_call_operand.hbm [shape: f32[2,5], index: 1, kind: input, shape index: {}]
  %s2 = inlined_call_operand.hbm [shape: f32[2,2,2,256], index: 2, kind: output, shape index: {}]
  %s3 = sld [smem:[#allocation0]]
  $region26: #{tpu_custom_call.1} parent=0
    _
  %s5 = ssub.s32 1, %s3
  %s6 = scalar_select 0, %s5, %s3
  $region1: #{tpu_custom_call.1} parent=0
    #allocation2 [shape = 'u8[8192]{0}', space=vmem, size = 0x2000, scoped, tag = 'input window, operand 0, single buffered']
    #allocation3 [shape = 's32[1]{0}', space=sflag, size = 0x4, scoped, tag = 'scoped memory for tpu_custom_call.1']
    #allocation4 [shape = 's32[1]{0}', space=sflag, size = 0x4, scoped, tag = 'scoped memory for tpu_custom_call.1']
    #allocation5 [shape = 'u8[1024]{0}', space=vmem, size = 0x400, scoped, tag = 'input window, operand 1, single buffered']
    #allocation6 [shape = 's32[1]{0}', space=sflag, size = 0x4, scoped, tag = 'scoped memory for tpu_custom_call.1']
    #allocation7 [shape = 'u8[8192]{0}', space=vmem, size = 0x2000, scoped, tag = 'output window, operand 0, single buffered']
    %7 = vsyncpa [#allocation3], 0
    %8 = vsyncpa [#allocation6], 0
    %9 = vsyncpa [#allocation4], 0
    // Predicated region
    $region2: #{tpu_custom_call.1} parent=1 // pred_check
      _
    $region3: #{tpu_custom_call.1} parent=1 // pred_check_branch
      %11 = sbr.rel (0) target = $region5
    $region4: #{tpu_custom_call.1} parent=1 // pred_region
      %s13 = ssub.s32 256, 256
      %14 = vsyncadd [#allocation3], %s13
      %s15 = sshll.u32 [#allocation2], 4
      %s16 = int_to_ptr.vmem [resolvable:$true] %s15
      %21 = dma.hbm_to_vmem [thread:$0]  %s0, 256, %s16, [#allocation3], 64, 64, 4
    $region5: #{tpu_custom_call.1} parent=1 // pred_fallthru
      _
    // Predicated region
    $region6: #{tpu_custom_call.1} parent=1 // pred_check
      _
    $region7: #{tpu_custom_call.1} parent=1 // pred_check_branch
      %23 = sbr.rel (0) target = $region9
    $region8: #{tpu_custom_call.1} parent=1 // pred_region
      %s25 = ssub.s32 32, 32
      %26 = vsyncadd [#allocation6], %s25
      %s28 = sshll.u32 [#allocation5], 4
      %s29 = int_to_ptr.vmem [resolvable:$true] %s28
      %31 = dma.hbm_to_vmem [thread:$0]  %s1, 32, %s29, [#allocation6]
    $region9: #{tpu_custom_call.1} parent=1 // pred_fallthru
      _
    // Predicated region
    $region10: #{tpu_custom_call.1} parent=1 // pred_check
      _
    $region11: #{tpu_custom_call.1} parent=1 // pred_check_branch
      %33 = sbr.rel (0) target = $region13
    $region12: #{tpu_custom_call.1} parent=1 // pred_region
      %34 = dma.done [#allocation3], 256
    $region13: #{tpu_custom_call.1} parent=1 // pred_fallthru
      _
    // Predicated region
    $region14: #{tpu_custom_call.1} parent=1 // pred_check
      _
    $region15: #{tpu_custom_call.1} parent=1 // pred_check_branch
      %36 = sbr.rel (0) target = $region17
    $region16: #{tpu_custom_call.1} parent=1 // pred_region
      %37 = dma.done [#allocation6], 32
    $region17: #{tpu_custom_call.1} parent=1 // pred_fallthru
      _
    %v38 = vld [vmem:[#allocation2] sm:$0xf]
    %v39 = vld [vmem:[#allocation2 + $0x8] sm:$0xf]
    %s40 = scalar_lea.vmem [#allocation2], 4
    %v41 = vld [vmem:[%s40] sm:$0xf]
    %v42 = vld [vmem:[%s40 + $0x8] sm:$0xf]
    %v46 = vunpack.c.l.s4 1983009808
    %v47 = vunpack.c.0.s8 %v46
    %v48 = vlaneseq
    %v49 = vshrl.u32 %v48, 7
    %v50 = vsub.s32 %v47, %v49
    %v51 = vrot.slane %v38, %v50
    %v52 = vcombine.high %v51, %v51
    %v54 = vunpack.c.l.s4 1983009808
    %v55 = vunpack.c.0.s8 %v54
    %v56 = vlaneseq
    %v57 = vshrl.u32 %v56, 7
    %v58 = vsub.s32 %v55, %v57
    %v59 = vrot.slane %v39, %v58
    %v60 = vcombine.high %v59, %v59
    %vm65 = vcmask 1041408
    %v66 = vsel %vm65, %v51, 0.0
    %v67 = vsel %vm65, %v52, 0.0
    %v68 = vadd.f32 %v66, %v67
    %v69 = vsel %vm65, %v59, 0.0
    %v70 = vadd.f32 %v68, %v69
    %v71 = vsel %vm65, %v60, 0.0
    %v72 = vadd.f32 %v70, %v71
    %73 = vadd.xlane.f32.xlu0 %v72
    %v74 = vpop.xlane.xlu0 %73
    %v75 = vmul.f32 %v74, 0.001953125
    %v79 = vunpack.c.l.s4 1983009808
    %v80 = vunpack.c.0.s8 %v79
    %v81 = vlaneseq
    %v82 = vshrl.u32 %v81, 7
    %v83 = vsub.s32 %v80, %v82
    %v84 = vrot.slane %v41, %v83
    %v85 = vcombine.high %v84, %v84
    %v87 = vunpack.c.l.s4 1983009808
    %v88 = vunpack.c.0.s8 %v87
    %v89 = vlaneseq
    %v90 = vshrl.u32 %v89, 7
    %v91 = vsub.s32 %v88, %v90
    %v92 = vrot.slane %v42, %v91
    %v93 = vcombine.high %v92, %v92
    %v98 = vsel %vm65, %v84, 0.0
    %v99 = vsel %vm65, %v85, 0.0
    %v100 = vadd.f32 %v98, %v99
    %v101 = vsel %vm65, %v92, 0.0
    %v102 = vadd.f32 %v100, %v101
    %v103 = vsel %vm65, %v93, 0.0
    %v104 = vadd.f32 %v102, %v103
    %105 = vadd.xlane.f32.xlu0 %v104
    %v106 = vpop.xlane.xlu0 %105
    %v107 = vmul.f32 %v106, 0.001953125
    %v110 = vunpack.c.l.s4 269488144
    %v111 = vunpack.c.0.s8 %v110
    %v112 = vlaneseq
    %v113 = vshrl.u32 %v112, 7
    %v114 = vsub.s32 %v111, %v113
    %v115 = vrot.slane %v75, %v114
    %v117 = vsub.f32 %v38, %v115
    %v118 = vsub.f32 %v39, %v115
    %v121 = vunpack.c.l.s4 269488144
    %v122 = vunpack.c.0.s8 %v121
    %v123 = vlaneseq
    %v124 = vshrl.u32 %v123, 7
    %v125 = vsub.s32 %v122, %v124
    %v126 = vrot.slane %v107, %v125
    %v128 = vsub.f32 %v41, %v126
    %v129 = vsub.f32 %v42, %v126
    %v130 = vmul.f32 %v117, %v117
    %v131 = vmul.f32 %v118, %v118
    %v135 = vunpack.c.l.s4 1983009808
    %v136 = vunpack.c.0.s8 %v135
    %v137 = vlaneseq
    %v138 = vshrl.u32 %v137, 7
    %v139 = vsub.s32 %v136, %v138
    %v140 = vrot.slane %v130, %v139
    %v141 = vcombine.high %v140, %v140
    %v143 = vunpack.c.l.s4 1983009808
    %v144 = vunpack.c.0.s8 %v143
    %v145 = vlaneseq
    %v146 = vshrl.u32 %v145, 7
    %v147 = vsub.s32 %v144, %v146
    %v148 = vrot.slane %v131, %v147
    %v149 = vcombine.high %v148, %v148
    %v154 = vsel %vm65, %v140, 0.0
    %v155 = vsel %vm65, %v141, 0.0
    %v156 = vadd.f32 %v154, %v155
    %v157 = vsel %vm65, %v148, 0.0
    %v158 = vadd.f32 %v156, %v157
    %v159 = vsel %vm65, %v149, 0.0
    %v160 = vadd.f32 %v158, %v159
    %161 = vadd.xlane.f32.xlu0 %v160
    %v162 = vpop.xlane.xlu0 %161
    %v163 = vmul.f32 %v162, 0.001953125
    %v164 = vadd.f32 %v163, 1e-05
    %v165 = vmul.f32 %v117, %v128
    %v166 = vmul.f32 %v118, %v129
    %v170 = vunpack.c.l.s4 1983009808
    %v171 = vunpack.c.0.s8 %v170
    %v172 = vlaneseq
    %v173 = vshrl.u32 %v172, 7
    %v174 = vsub.s32 %v171, %v173
    %v175 = vrot.slane %v165, %v174
    %v176 = vcombine.high %v175, %v175
    %v178 = vunpack.c.l.s4 1983009808
    %v179 = vunpack.c.0.s8 %v178
    %v180 = vlaneseq
    %v181 = vshrl.u32 %v180, 7
    %v182 = vsub.s32 %v179, %v181
    %v183 = vrot.slane %v166, %v182
    %v184 = vcombine.high %v183, %v183
    %v189 = vsel %vm65, %v175, 0.0
    %v190 = vsel %vm65, %v176, 0.0
    %v191 = vadd.f32 %v189, %v190
    %v192 = vsel %vm65, %v183, 0.0
    %v193 = vadd.f32 %v191, %v192
    %v194 = vsel %vm65, %v184, 0.0
    %v195 = vadd.f32 %v193, %v194
    %196 = vadd.xlane.f32.xlu0 %v195
    %v197 = vpop.xlane.xlu0 %196
    %v198 = vmul.f32 %v197, 0.001953125
    %v199 = vmul.f32 %v128, %v128
    %v200 = vmul.f32 %v129, %v129
    %v204 = vunpack.c.l.s4 1983009808
    %v205 = vunpack.c.0.s8 %v204
    %v206 = vlaneseq
    %v207 = vshrl.u32 %v206, 7
    %v208 = vsub.s32 %v205, %v207
    %v209 = vrot.slane %v199, %v208
    %v210 = vcombine.high %v209, %v209
    %v212 = vunpack.c.l.s4 1983009808
    %v213 = vunpack.c.0.s8 %v212
    %v214 = vlaneseq
    %v215 = vshrl.u32 %v214, 7
    %v216 = vsub.s32 %v213, %v215
    %v217 = vrot.slane %v200, %v216
    %v218 = vcombine.high %v217, %v217
    %v223 = vsel %vm65, %v209, 0.0
    %v224 = vsel %vm65, %v210, 0.0
    %v225 = vadd.f32 %v223, %v224
    %v226 = vsel %vm65, %v217, 0.0
    %v227 = vadd.f32 %v225, %v226
    %v228 = vsel %vm65, %v218, 0.0
    %v229 = vadd.f32 %v227, %v228
    %230 = vadd.xlane.f32.xlu0 %v229
    %v231 = vpop.xlane.xlu0 %230
    %v232 = vmul.f32 %v231, 0.001953125
    %v233 = vadd.f32 %v232, 1e-05
    %v234 = vadd.f32 %v164, %v233
    %v235 = vmul.f32 %v164, %v233
    %v236 = vmul.f32 %v198, %v198
    %v237 = vsub.f32 %v235, %v236
    %v238 = vrsqrt.pop %v237
    %v239 = vmul.f32 %v237, %v238
    %vm240 = vcmp.eq.f32.partialorder %v237, inf
    %v241 = vsel %vm240, %v237, %v239
    %vm242 = vcmp.eq.f32.partialorder %v237, 0.0
    %v243 = vand.u32 %v237, 2147483648
    %v244 = vsel %vm242, %v243, %v241
    %v245 = vmul.f32 %v244, 2.0
    %v246 = vadd.f32 %v234, %v245
    %v247 = vrsqrt.pop %v246
    %v248 = vmul.f32 %v246, %v247
    %vm249 = vcmp.eq.f32.partialorder %v246, inf
    %v250 = vsel %vm249, %v246, %v248
    %vm251 = vcmp.eq.f32.partialorder %v246, 0.0
    %v252 = vand.u32 %v246, 2147483648
    %v253 = vsel %vm251, %v252, %v250
    %v254 = vmul.f32 %v244, %v253
    %v255 = vrcp.pop %v254
    %v256 = vadd.f32 %v244, %v233
    %v257 = vmul.f32 %v256, %v255
    %v258 = vadd.f32 %v244, %v164
    %v259 = vmul.f32 %v258, %v255
    %v260 = vsub.f32 0.0, %v198
    %v261 = vmul.f32 %v260, %v255
    %v262 = vld [vmem:[#allocation5] sm:$0x3]
    %v263 = vmul.f32 %v262, %v257
    %v264 = vmul.f32 %v262, %v261
    %266 = vrot.lane.b32.xlu0 %v264, 127
    %v267 = vpop.permute.xlu0 %266
    %v269 = vadd.f32 %v263, %v267
    %v270 = vmul.f32 %v262, %v259
    %272 = vrot.lane.b32.xlu0 %v270, 127
    %v273 = vpop.permute.xlu0 %272
    %v275 = vadd.f32 %v264, %v273
    %v276 = vmul.f32 %v269, %v75
    %278 = vrot.lane.b32.xlu0 %v276, 3
    %v279 = vpop.permute.xlu0 %278
    %v281 = vsub.f32 %v262, %v279
    %v282 = vmul.f32 %v275, %v107
    %284 = vrot.lane.b32.xlu0 %v282, 3
    %v285 = vpop.permute.xlu0 %284
    %v287 = vsub.f32 %v281, %v285
    %289 = vset.pattern.permute.xlu0 0
    %290 = vperm.xlu0 %289, %v269
    %v291 = vpop.permute.xlu0 %290
    %v293 = vmul.f32 %v291, %v51
    %v294 = vmul.f32 %v291, %v52
    %v295 = vmul.f32 %v291, %v59
    %v296 = vmul.f32 %v291, %v60
    %298 = vset.pattern.permute.xlu0 0
    %299 = vperm.xlu0 %298, %v275
    %v300 = vpop.permute.xlu0 %299
    %v302 = vmul.f32 %v300, %v84
    %v303 = vmul.f32 %v300, %v85
    %v304 = vmul.f32 %v300, %v92
    %v305 = vmul.f32 %v300, %v93
    %v306 = vadd.f32 %v293, %v302
    %v307 = vadd.f32 %v294, %v303
    %v308 = vadd.f32 %v295, %v304
    %v309 = vadd.f32 %v296, %v305
    %311 = vset.pattern.permute.xlu0 3
    %312 = vperm.xlu0 %311, %v287
    %v313 = vpop.permute.xlu0 %312
    %v315 = vadd.f32 %v306, %v313
    %v316 = vadd.f32 %v307, %v313
    %v317 = vadd.f32 %v308, %v313
    %v318 = vadd.f32 %v309, %v313
    %v323 = vcombine.low %v315, %v316
    %v325 = vunpack.c.l.s4 1983009808
    %v326 = vunpack.c.0.s8 %v325
    %v327 = vlaneseq
    %v328 = vshrl.u32 %v327, 7
    %v329 = vsub.s32 %v326, %v328
    %v330 = vrot.slane %v323, %v329
    %v331 = vcombine.low %v317, %v318
    %v333 = vunpack.c.l.s4 1983009808
    %v334 = vunpack.c.0.s8 %v333
    %v335 = vlaneseq
    %v336 = vshrl.u32 %v335, 7
    %v337 = vsub.s32 %v334, %v336
    %v338 = vrot.slane %v331, %v337
    %341 = vst [vmem:[#allocation7] sm:$0xf] %v330
    %342 = vst [vmem:[#allocation7 + $0x8] sm:$0xf] %v338
    %343 = vset.pattern.permute.xlu0 1
    %344 = vperm.xlu0 %343, %v269
    %v345 = vpop.permute.xlu0 %344
    %v347 = vmul.f32 %v345, %v51
    %v348 = vmul.f32 %v345, %v52
    %v349 = vmul.f32 %v345, %v59
    %v350 = vmul.f32 %v345, %v60
    %351 = vset.pattern.permute.xlu0 1
    %352 = vperm.xlu0 %351, %v275
    %v353 = vpop.permute.xlu0 %352
    %v355 = vmul.f32 %v353, %v84
    %v356 = vmul.f32 %v353, %v85
    %v357 = vmul.f32 %v353, %v92
    %v358 = vmul.f32 %v353, %v93
    %v359 = vadd.f32 %v347, %v355
    %v360 = vadd.f32 %v348, %v356
    %v361 = vadd.f32 %v349, %v357
    %v362 = vadd.f32 %v350, %v358
    %363 = vset.pattern.permute.xlu0 4
    %364 = vperm.xlu0 %363, %v287
    %v365 = vpop.permute.xlu0 %364
    %v367 = vadd.f32 %v359, %v365
    %v368 = vadd.f32 %v360, %v365
    %v369 = vadd.f32 %v361, %v365
    %v370 = vadd.f32 %v362, %v365
    %v375 = vcombine.low %v367, %v368
    %v377 = vunpack.c.l.s4 1983009808
    %v378 = vunpack.c.0.s8 %v377
    %v379 = vlaneseq
    %v380 = vshrl.u32 %v379, 7
    %v381 = vsub.s32 %v378, %v380
    %v382 = vrot.slane %v375, %v381
    %v383 = vcombine.low %v369, %v370
    %v385 = vunpack.c.l.s4 1983009808
    %v386 = vunpack.c.0.s8 %v385
    %v387 = vlaneseq
    %v388 = vshrl.u32 %v387, 7
    %v389 = vsub.s32 %v386, %v388
    %v390 = vrot.slane %v383, %v389
    %s393 = scalar_lea.vmem [#allocation7], 4
    %394 = vst [vmem:[%s393] sm:$0xf] %v382
    %395 = vst [vmem:[%s393 + $0x8] sm:$0xf] %v390
    // Predicated region
    $region18: #{tpu_custom_call.1} parent=1 // pred_check
      _
    $region19: #{tpu_custom_call.1} parent=1 // pred_check_branch
      %397 = sbr.rel (0) target = $region21
    $region20: #{tpu_custom_call.1} parent=1 // pred_region
      %s399 = ssub.s32 256, 256
      %400 = vsyncadd [#allocation4], %s399
      %s401 = sshll.u32 [#allocation7], 4
      %s402 = int_to_ptr.vmem [resolvable:$true] %s401
      %407 = dma.vmem_to_hbm [thread:$0]  %s402, 256, %s2, [#allocation4], 64, 64, 4
    $region21: #{tpu_custom_call.1} parent=1 // pred_fallthru
      _
    // Predicated region
    $region22: #{tpu_custom_call.1} parent=1 // pred_check
      _
    $region23: #{tpu_custom_call.1} parent=1 // pred_check_branch
      %409 = sbr.rel (0) target = $region25
    $region24: #{tpu_custom_call.1} parent=1 // pred_region
      %410 = dma.done [#allocation4], 256
    $region25: #{tpu_custom_call.1} parent=1 // pred_fallthru
      _
    %411 = vsyncpa [#allocation3], 1
    %412 = vsyncpa [#allocation6], 1
    %413 = vsyncpa [#allocation4], 1

</llo_original>
